<compile_context>
chip_gen: v7x
topology: tpu7x:2x2x1
jax: 0.10.0
libtpu: 0.0.40
codegen_flags: <defaults>
</compile_context>

<pallas_src>
import functools

import jax
import jax.numpy as jnp
from jax.experimental import pallas as pl
from jax.experimental.pallas import tpu as pltpu


_VPU_CHANNEL_THRESHOLD = 32  # below this, use the tiny-channel VPU path


# ---------------------------------------------------------------------------
# MXU path: mode-batched complex matmul
# ---------------------------------------------------------------------------
def _spectral_matmul_kernel(ar_ref, ai_ref, wr_ref, wi_ref, or_ref, oi_ref):
    """out[m] = a[m] @ w[m] (complex), for one tile of modes m.

    ar/ai : (tM, B,   Cin)   real / imag of the retained rfft modes
    wr/wi : (tM, Cin, Cout)  real / imag of the spectral weights
    or/oi : (tM, B,   Cout)
    """
    ar = ar_ref[...]
    ai = ai_ref[...]
    wr = wr_ref[...]
    wi = wi_ref[...]
    # Mode axis is the matmul batch dim; the Cin contraction runs on the MXU.
    mm = functools.partial(jnp.einsum, 'mbi,mio->mbo',
                           preferred_element_type=jnp.float32)
    or_ref[...] = mm(ar, wr) - mm(ai, wi)
    oi_ref[...] = mm(ar, wi) + mm(ai, wr)


def _padded_plane_bytes(rows, cols, itemsize=4):
    """f32 VMEM bytes of one (rows, cols) plane after (8,128) tile padding."""
    return (pl.cdiv(rows, 8) * 8) * (pl.cdiv(cols, 128) * 128) * itemsize


def _choose_mode_tile(modes, b, ci, co, budget_bytes):
    """Largest mode-tile whose double-buffered blocks fit the VMEM budget."""
    per_mode = 2 * (  # x2: pipeline double-buffering
        2 * _padded_plane_bytes(ci, co)    # wr, wi
        + 2 * _padded_plane_bytes(b, ci)   # ar, ai
        + 2 * _padded_plane_bytes(b, co))  # or, oi
    tile = max(1, budget_bytes // per_mode)
    return int(min(tile, modes))


def _vmem_limit_bytes():
    """Scoped VMEM limit derived from physical VMEM (v7x: 64 MiB, else 128)."""
    try:
        cap = int(pltpu.get_tpu_info().vmem_capacity_bytes)
    except Exception:
        cap = 64 * 1024 * 1024  # conservative (v7x per-core) fallback
    return min(cap // 2, 64 * 1024 * 1024)


def _compl_mul1d_mxu(ar, ai, wr, wi):
    """einsum('bix,iox->box') as a mode-batched MXU matmul.

    ar/ai: (M, B, Ci) f32;  wr/wi: (M, Ci, Co) f32
    returns (out_r, out_i): (M, B, Co) f32
    """
    M, B, Ci = ar.shape
    Co = wr.shape[2]

    vmem_limit = _vmem_limit_bytes()
    tm = _choose_mode_tile(M, B, Ci, Co, budget_bytes=vmem_limit // 4)
    n_tiles = pl.cdiv(M, tm)
    m_pad = n_tiles * tm
    if m_pad != M:
        pad = ((0, m_pad - M), (0, 0), (0, 0))
        ar = jnp.pad(ar, pad)
        ai = jnp.pad(ai, pad)
        wr = jnp.pad(wr, pad)
        wi = jnp.pad(wi, pad)

    act_spec = pl.BlockSpec((tm, B, Ci), lambda m: (m, 0, 0))
    w_spec = pl.BlockSpec((tm, Ci, Co), lambda m: (m, 0, 0))
    out_spec = pl.BlockSpec((tm, B, Co), lambda m: (m, 0, 0))

    out_r, out_i = pl.pallas_call(
        _spectral_matmul_kernel,
        grid=(n_tiles,),
        in_specs=[act_spec, act_spec, w_spec, w_spec],
        out_specs=(out_spec, out_spec),
        out_shape=(
            jax.ShapeDtypeStruct((m_pad, B, Co), jnp.float32),
            jax.ShapeDtypeStruct((m_pad, B, Co), jnp.float32),
        ),
        compiler_params=pltpu.CompilerParams(
            dimension_semantics=("parallel",),
            vmem_limit_bytes=vmem_limit,
        ),
    )(ar, ai, wr, wi)
    return out_r[:M], out_i[:M]


# ---------------------------------------------------------------------------
# VPU path: tiny Cin/Cout broadcast-multiply-reduce (modes on lanes)
# ---------------------------------------------------------------------------
def _spectral_vpu_kernel(ar_ref, ai_ref, wr_ref, wi_ref, or_ref, oi_ref):
    """Complex contraction 'ix,iox->ox' for one batch element (tiny channels).

    ar/ai : (1, Cin, M);  wr/wi : (Cin, Cout, M);  or/oi : (1, Cout, M)
    """
    ar = ar_ref[0][:, None, :]       # (Cin, 1, M) — sublane broadcast over Cout
    ai = ai_ref[0][:, None, :]
    wr = wr_ref[...]                 # (Cin, Cout, M)
    wi = wi_ref[...]
    or_ref[0] = jnp.sum(ar * wr - ai * wi, axis=0)
    oi_ref[0] = jnp.sum(ar * wi + ai * wr, axis=0)


def _compl_mul1d_vpu(ar, ai, wr, wi):
    """ar/ai: (B, Ci, M) f32; wr/wi: (Ci, Co, M) f32 -> (B, Co, M) f32 x 2."""
    B, Ci, M = ar.shape
    Co = wr.shape[1]
    act_spec = pl.BlockSpec((1, Ci, M), lambda b: (b, 0, 0))
    w_spec = pl.BlockSpec((Ci, Co, M), lambda b: (0, 0, 0))   # resident weights
    out_spec = pl.BlockSpec((1, Co, M), lambda b: (b, 0, 0))
    return pl.pallas_call(
        _spectral_vpu_kernel,
        grid=(B,),
        in_specs=[act_spec, act_spec, w_spec, w_spec],
        out_specs=(out_spec, out_spec),
        out_shape=(
            jax.ShapeDtypeStruct((B, Co, M), jnp.float32),
            jax.ShapeDtypeStruct((B, Co, M), jnp.float32),
        ),
        compiler_params=pltpu.CompilerParams(
            dimension_semantics=("parallel",),
            vmem_limit_bytes=32 * 1024 * 1024,
        ),
    )(ar, ai, wr, wi)


# ---------------------------------------------------------------------------
# Forward pass
# ---------------------------------------------------------------------------
@functools.partial(jax.jit, static_argnames=("modes1",))
def spectral_conv1d(x, weights1, modes1):
    """Forward pass matching the PyTorch SpectralConv1d.

    x:        float32   (B, Cin, N)
    weights1: complex64 (Cin, Cout, modes1)
    returns:  float32   (B, Cout, N)
    """
    B, Ci, N = x.shape
    Co = weights1.shape[1]
    Nf = N // 2 + 1

    # TODO(synk): rfft/irfft have no Pallas TPU primitive; they stay in XLA.
    x_ft = jnp.fft.rfft(x)                       # (B, Cin, Nf) complex64
    a = x_ft[:, :, :modes1]

    ar = jnp.real(a).astype(jnp.float32)
    ai = jnp.imag(a).astype(jnp.float32)
    wr = jnp.real(weights1).astype(jnp.float32)
    wi = jnp.imag(weights1).astype(jnp.float32)

    if max(Ci, Co) >= _VPU_CHANNEL_THRESHOLD:
        # MXU path: mode-batched matmul, (M,B,Ci) @ (M,Ci,Co) -> (M,B,Co).
        out_r, out_i = _compl_mul1d_mxu(
            jnp.transpose(ar, (2, 0, 1)), jnp.transpose(ai, (2, 0, 1)),
            jnp.transpose(wr, (2, 0, 1)), jnp.transpose(wi, (2, 0, 1)))
        out_r = jnp.transpose(out_r, (1, 2, 0))   # (B, Co, M)
        out_i = jnp.transpose(out_i, (1, 2, 0))
    else:
        out_r, out_i = _compl_mul1d_vpu(ar, ai, wr, wi)

    out_ft = jnp.zeros((B, Co, Nf), dtype=jnp.complex64)
    out_ft = out_ft.at[:, :, :modes1].set(jax.lax.complex(out_r, out_i))
    return jnp.fft.irfft(out_ft, n=N)


def _reference_forward(x, weights1, modes1):
    """Pure-JAX reference (mirrors the torch module) for validation."""
    B, Ci, N = x.shape
    Co = weights1.shape[1]
    Nf = N // 2 + 1
    x_ft = jnp.fft.rfft(x)
    out_ft = jnp.zeros((B, Co, Nf), dtype=jnp.complex64)
    out_ft = out_ft.at[:, :, :modes1].set(
        jnp.einsum('bix,iox->box', x_ft[:, :, :modes1], weights1))
    return jnp.fft.irfft(out_ft, n=N)


def _make_inputs(key, b, ci, co, n, modes):
    k_x, k_wr, k_wi = jax.random.split(key, 3)
    x = jax.random.normal(k_x, (b, ci, n), dtype=jnp.float32)
    scale = 1.0 / (ci * co)   # matches torch: scale * rand(cfloat)
    w = jax.lax.complex(
        scale * jax.random.uniform(k_wr, (ci, co, modes), dtype=jnp.float32),
        scale * jax.random.uniform(k_wi, (ci, co, modes), dtype=jnp.float32))
    return x, w


if __name__ == "__main__":
    key = jax.random.PRNGKey(0)
    k1, k2 = jax.random.split(key)

    # Small config (exercises the tiny-channel VPU path).
    x, w = _make_inputs(k1, b=2, ci=4, co=4, n=64, modes=16)
    out = jax.block_until_ready(spectral_conv1d(x, w, modes1=16))
    ref = jax.block_until_ready(_reference_forward(x, w, 16))
    assert out.shape == ref.shape == (2, 4, 64)
    assert jnp.allclose(out, ref, atol=1e-5, rtol=1e-5), "VPU path mismatch"

    # Larger-channel config (exercises the MXU mode-batched-matmul path,
    # including non-128-aligned Cin/Cout and mode counts).
    x2, w2 = _make_inputs(k2, b=2, ci=48, co=40, n=128, modes=20)
    out2 = jax.block_until_ready(spectral_conv1d(x2, w2, modes1=20))
    ref2 = jax.block_until_ready(_reference_forward(x2, w2, 20))
    assert out2.shape == ref2.shape == (2, 40, 128)
    denom = jnp.maximum(jnp.max(jnp.abs(ref2)), 1e-6)
    rel = jnp.max(jnp.abs(out2 - ref2)) / denom
    # Normalized tolerance covers TPU default matmul precision differences
    # between the in-kernel MXU contraction and the XLA reference einsum.
    assert rel < 1e-2, f"MXU path mismatch: normalized max error {rel}"

    print("KERNEL_OK")
</pallas_src>

<mosaic_0001>
module attributes {stable_mosaic.version = 11 : i64} {
  func.func @_spectral_vpu_kernel(%arg0: i32, %arg1: memref<1x4x16xf32, #tpu.memory_space<vmem>>, %arg2: memref<1x4x16xf32, #tpu.memory_space<vmem>>, %arg3: memref<4x4x16xf32, #tpu.memory_space<vmem>>, %arg4: memref<4x4x16xf32, #tpu.memory_space<vmem>>, %arg5: memref<1x4x16xf32, #tpu.memory_space<vmem>>, %arg6: memref<1x4x16xf32, #tpu.memory_space<vmem>>) attributes {dimension_semantics = [#tpu.dimension_semantics<parallel>], iteration_bounds = array<i64: 2>, scalar_prefetch = 0 : i64, scratch_operands = 0 : i64, tpu.core_type = #tpu.core_type<tc>, window_params = [{transform_indices = @transform_0, window_bounds = array<i64: 1, 4, 16>}, {transform_indices = @transform_1, window_bounds = array<i64: 1, 4, 16>}, {pipeline_mode = #tpu.pipeline_mode<synchronous>, transform_indices = @transform_2, window_bounds = array<i64: 4, 4, 16>}, {pipeline_mode = #tpu.pipeline_mode<synchronous>, transform_indices = @transform_3, window_bounds = array<i64: 4, 4, 16>}, {transform_indices = @transform_4, window_bounds = array<i64: 1, 4, 16>}, {transform_indices = @transform_5, window_bounds = array<i64: 1, 4, 16>}]} {
    %c0 = arith.constant 0 : index
    %c0_0 = arith.constant 0 : index
    %c0_1 = arith.constant 0 : index
    %0 = vector.load %arg1[%c0, %c0_0, %c0_1] : memref<1x4x16xf32, #tpu.memory_space<vmem>>, vector<1x4x16xf32>
    %1 = vector.shape_cast %0 : vector<1x4x16xf32> to vector<4x16xf32>
    %2 = vector.shape_cast %1 : vector<4x16xf32> to vector<4x1x16xf32>
    %c0_2 = arith.constant 0 : index
    %c0_3 = arith.constant 0 : index
    %c0_4 = arith.constant 0 : index
    %3 = vector.load %arg2[%c0_2, %c0_3, %c0_4] : memref<1x4x16xf32, #tpu.memory_space<vmem>>, vector<1x4x16xf32>
    %4 = vector.shape_cast %3 : vector<1x4x16xf32> to vector<4x16xf32>
    %5 = vector.shape_cast %4 : vector<4x16xf32> to vector<4x1x16xf32>
    %c0_5 = arith.constant 0 : index
    %c0_6 = arith.constant 0 : index
    %c0_7 = arith.constant 0 : index
    %6 = vector.load %arg3[%c0_5, %c0_6, %c0_7] : memref<4x4x16xf32, #tpu.memory_space<vmem>>, vector<4x4x16xf32>
    %c0_8 = arith.constant 0 : index
    %c0_9 = arith.constant 0 : index
    %c0_10 = arith.constant 0 : index
    %7 = vector.load %arg4[%c0_8, %c0_9, %c0_10] : memref<4x4x16xf32, #tpu.memory_space<vmem>>, vector<4x4x16xf32>
    %8 = vector.broadcast %2 : vector<4x1x16xf32> to vector<4x4x16xf32>
    %9 = arith.mulf %8, %6 : vector<4x4x16xf32>
    %10 = vector.broadcast %5 : vector<4x1x16xf32> to vector<4x4x16xf32>
    %11 = arith.mulf %10, %7 : vector<4x4x16xf32>
    %12 = arith.subf %9, %11 : vector<4x4x16xf32>
    %cst = arith.constant dense<0.000000e+00> : vector<4x16xf32>
    %13 = vector.multi_reduction <add>, %12, %cst [0] : vector<4x4x16xf32> to vector<4x16xf32>
    %c0_11 = arith.constant 0 : index
    %c0_12 = arith.constant 0 : index
    %c0_13 = arith.constant 0 : index
    %14 = vector.load %arg5[%c0_11, %c0_12, %c0_13] : memref<1x4x16xf32, #tpu.memory_space<vmem>>, vector<1x4x16xf32>
    %15 = vector.shape_cast %14 : vector<1x4x16xf32> to vector<4x16xf32>
    %16 = vector.shape_cast %13 : vector<4x16xf32> to vector<1x4x16xf32>
    tpu.vector_store %arg5[%c0_11, %c0_12, %c0_13], %16 {strides = array<i32>} : memref<1x4x16xf32, #tpu.memory_space<vmem>>, vector<1x4x16xf32>,
    %17 = vector.broadcast %2 : vector<4x1x16xf32> to vector<4x4x16xf32>
    %18 = arith.mulf %17, %7 : vector<4x4x16xf32>
    %19 = vector.broadcast %5 : vector<4x1x16xf32> to vector<4x4x16xf32>
    %20 = arith.mulf %19, %6 : vector<4x4x16xf32>
    %21 = arith.addf %18, %20 : vector<4x4x16xf32>
    %cst_14 = arith.constant dense<0.000000e+00> : vector<4x16xf32>
    %22 = vector.multi_reduction <add>, %21, %cst_14 [0] : vector<4x4x16xf32> to vector<4x16xf32>
    %c0_15 = arith.constant 0 : index
    %c0_16 = arith.constant 0 : index
    %c0_17 = arith.constant 0 : index
    %23 = vector.load %arg6[%c0_15, %c0_16, %c0_17] : memref<1x4x16xf32, #tpu.memory_space<vmem>>, vector<1x4x16xf32>
    %24 = vector.shape_cast %23 : vector<1x4x16xf32> to vector<4x16xf32>
    %25 = vector.shape_cast %22 : vector<4x16xf32> to vector<1x4x16xf32>
    tpu.vector_store %arg6[%c0_15, %c0_16, %c0_17], %25 {strides = array<i32>} : memref<1x4x16xf32, #tpu.memory_space<vmem>>, vector<1x4x16xf32>,
    return
  }
  func.func @transform_0(%arg0: i32) -> (i32, i32, i32) {
    %c0_i32 = arith.constant 0 : i32
    %c0_i32_0 = arith.constant 0 : i32
    %c0_i32_1 = arith.constant 0 : i32
    return %arg0, %c0_i32, %c0_i32_0 : i32, i32, i32
  }
  func.func @transform_1(%arg0: i32) -> (i32, i32, i32) {
    %c0_i32 = arith.constant 0 : i32
    %c0_i32_0 = arith.constant 0 : i32
    %c0_i32_1 = arith.constant 0 : i32
    return %arg0, %c0_i32, %c0_i32_0 : i32, i32, i32
  }
  func.func @transform_2(%arg0: i32) -> (i32, i32, i32) {
    %c0_i32 = arith.constant 0 : i32
    %c0_i32_0 = arith.constant 0 : i32
    %c0_i32_1 = arith.constant 0 : i32
    %c0_i32_2 = arith.constant 0 : i32
    return %c0_i32, %c0_i32_0, %c0_i32_1 : i32, i32, i32
  }
  func.func @transform_3(%arg0: i32) -> (i32, i32, i32) {
    %c0_i32 = arith.constant 0 : i32
    %c0_i32_0 = arith.constant 0 : i32
    %c0_i32_1 = arith.constant 0 : i32
    %c0_i32_2 = arith.constant 0 : i32
    return %c0_i32, %c0_i32_0, %c0_i32_1 : i32, i32, i32
  }
  func.func @transform_4(%arg0: i32) -> (i32, i32, i32) {
    %c0_i32 = arith.constant 0 : i32
    %c0_i32_0 = arith.constant 0 : i32
    %c0_i32_1 = arith.constant 0 : i32
    return %arg0, %c0_i32, %c0_i32_0 : i32, i32, i32
  }
  func.func @transform_5(%arg0: i32) -> (i32, i32, i32) {
    %c0_i32 = arith.constant 0 : i32
    %c0_i32_0 = arith.constant 0 : i32
    %c0_i32_1 = arith.constant 0 : i32
    return %arg0, %c0_i32, %c0_i32_0 : i32, i32, i32
  }
}

</mosaic_0001>

<llo_original>
// kernel: custom-call.1
$region0: #{custom-call.1}
  %s0 = inlined_call_operand.hbm [shape: c64[4,4,16], index: 0, kind: input, shape index: {}]
  %s1 = inlined_call_operand.vmem [shape: f32[4,4,16], index: 1, kind: output, shape index: {}]
  %s2 = scalar_lea.hbm %s0, 256
  $region1: #{custom-call.1} parent=0
    #allocation0 [shape = 's32[1]{0}', space=sflag, size = 0x4, scoped, tag = 'scoped memory for custom-call.1']
    %3 = vsyncpa [#allocation0], 0
    %s4 = sshll.u32 %s1, 4
    %s5 = int_to_ptr.vmem [resolvable:$true] %s4
    %7 = dma.hbm_to_vmem [thread:$0]  %s2, 256, %s5, [#allocation0]
    %8 = dma.done [#allocation0], 256
    %9 = vsyncpa [#allocation0], 1

// kernel: custom-call
$region0: #{custom-call}
  %s0 = inlined_call_operand.hbm [shape: c64[4,4,16], index: 0, kind: input, shape index: {}]
  %s1 = inlined_call_operand.vmem [shape: f32[4,4,16], index: 1, kind: output, shape index: {}]
  $region1: #{custom-call} parent=0
    #allocation0 [shape = 's32[1]{0}', space=sflag, size = 0x4, scoped, tag = 'scoped memory for custom-call']
    %2 = vsyncpa [#allocation0], 0
    %s3 = sshll.u32 %s1, 4
    %s4 = int_to_ptr.vmem [resolvable:$true] %s3
    %6 = dma.hbm_to_vmem [thread:$0]  %s0, 256, %s4, [#allocation0]
    %7 = dma.done [#allocation0], 256
    %8 = vsyncpa [#allocation0], 1

// kernel: reverse.0
$region0: #{reverse.0}
  %s0 = inlined_call_operand.vmem [shape: f32[2,4,31], index: 0, kind: input, shape index: {}]
  %s1 = inlined_call_operand.vmem [shape: f32[2,4,31], index: 1, kind: output, shape index: {}]
  %v2 = vlaneseq
  %v3 = vsub.s32 30, %v2
  %4 = vset.pattern.permute.xlu0 %v3
  $region1: #{reverse.0} parent=0
    #allocation0 [shape = 'u8[8192]{0}', space=vmem, size = 0x2000, scoped, tag = 'operand span for operand 0']
    #allocation1 [shape = 'u8[4096]{0}', space=vmem, size = 0x1000, scoped, tag = 'packed  for operand 0']
    #allocation2 [shape = 'u8[8192]{0}', space=vmem, size = 0x2000, scoped, tag = 'operand span for operand 1']
    #allocation3 [shape = 'u8[4096]{0}', space=vmem, size = 0x1000, scoped, tag = 'packed  for operand 1']
    // Predicated region
    $region2: #{reverse.0} parent=1 // pred_check
      _
    $region3: #{reverse.0} parent=1 // pred_check_branch
      %6 = sbr.rel (0) target = $region5
    $region4: #{reverse.0} parent=1 // pred_region
      // Predicated region
      $region6: #{reverse.0} parent=4 // pred_check
        _
      $region7: #{reverse.0} parent=4 // pred_check_branch
        %8 = sbr.rel target = $region9
      $region8: #{reverse.0} parent=4 // pred_region
        // Predicated region
        $region21: #{reverse.0} parent=8 // pred_check
          _
        $region22: #{reverse.0} parent=8 // pred_check_branch
          %25 = sbr.rel (0) target = $region24
        $region23: #{reverse.0} parent=8 // pred_region
          loop: start=0, step=1, limit=1
          $region25: #{reverse.0} parent=23 // loop_pre_header
            _
          $region26: #{reverse.0} parent=23 // loop_header
            %s27 = sphi 0, %s31
            %p28 = scmp.ge.s32.totalorder %s27, 1
            %s32 = sphi %s0, %s0
            %s33 = sphi [#allocation1], [#allocation1]
          $region27: #{reverse.0} parent=23 // loop_header_branch
            %30 = sbr.rel (%p28) target = $region31
          $region28: #{reverse.0} parent=23 // loop_body
            _
          $region29: #{reverse.0} parent=23 // loop_footer
            %s31 = sadd.s32 1, %s27
          $region30: #{reverse.0} parent=23 // loop_footer_branch
            %26 = sbr.rel target = $region26
          $region31: #{reverse.0} parent=23 // loop_exit
            _
          loop: start=0, step=1, limit=1
          $region32: #{reverse.0} parent=23 // loop_pre_header
            _
          $region33: #{reverse.0} parent=23 // loop_header
            %s36 = sphi 0, %s40
            %p37 = scmp.ge.s32.totalorder %s36, 1
            %s41 = sphi %s0, %s0
            %s42 = sphi [#allocation1], [#allocation1]
          $region34: #{reverse.0} parent=23 // loop_header_branch
            %39 = sbr.rel (%p37) target = $region38
          $region35: #{reverse.0} parent=23 // loop_body
            %v43 = vld [vmem:[%s41] sm:$0xf]
            %44 = vst [vmem:[%s42] sm:$0xf] %v43
            %v45 = vld [vmem:[%s41 + $0x4] sm:$0xf]
            %46 = vst [vmem:[%s42 + $0x4] sm:$0xf] %v45
          $region36: #{reverse.0} parent=23 // loop_footer
            %s40 = sadd.s32 1, %s36
          $region37: #{reverse.0} parent=23 // loop_footer_branch
            %35 = sbr.rel target = $region33
          $region38: #{reverse.0} parent=23 // loop_exit
            _
        $region24: #{reverse.0} parent=8 // pred_fallthru
          _
      $region9: #{reverse.0} parent=4 // pred_fallthru
        _
      // Predicated region
      $region10: #{reverse.0} parent=4 // pred_check
        _
      $region11: #{reverse.0} parent=4 // pred_check_branch
        %10 = sbr.rel (0) target = $region13
      $region12: #{reverse.0} parent=4 // pred_region
        loop: start=0, step=1, limit=1
        $region14: #{reverse.0} parent=12 // loop_pre_header
          _
        $region15: #{reverse.0} parent=12 // loop_header
          %s13 = sphi 0, %s17
          %p14 = scmp.ge.s32.totalorder %s13, 1
          %s18 = sphi %s0, %s0
          %s19 = sphi [#allocation1], [#allocation1]
        $region16: #{reverse.0} parent=12 // loop_header_branch
          %16 = sbr.rel (%p14) target = $region20
        $region17: #{reverse.0} parent=12 // loop_body
          %v20 = vld [vmem:[%s18] sm:$0xf]
          %21 = vst [vmem:[%s19] sm:$0xf] %v20
          %v22 = vld [vmem:[%s18 + $0x4] sm:$0xf]
          %23 = vst [vmem:[%s19 + $0x4] sm:$0xf] %v22
        $region18: #{reverse.0} parent=12 // loop_footer
          %s17 = sadd.s32 1, %s13
        $region19: #{reverse.0} parent=12 // loop_footer_branch
          %12 = sbr.rel target = $region15
        $region20: #{reverse.0} parent=12 // loop_exit
          _
      $region13: #{reverse.0} parent=4 // pred_fallthru
        _
    $region5: #{reverse.0} parent=1 // pred_fallthru
      _
    %47 = vnop
    %s49 = sshllo.u32 0, 4
    %s50 = scalar_lea.vmem [#allocation1], 4
    %v51 = vld [vmem:[%s50] sm:%s49]
    %s52 = scalar_lea.vmem [#allocation0], 8
    %53 = vst [vmem:[%s52] sm:%s49] %v51
    %v54 = vld [vmem:[#allocation1] sm:%s49]
    %55 = vst [vmem:[#allocation0] sm:%s49] %v54
    %v56 = vld [vmem:[#allocation0] sm:$0xff]
    %57 = vperm.xlu0 %4, %v56
    %v58 = vpop.permute.xlu0 %57
    %59 = vst [vmem:[#allocation2] sm:$0xff] %v58
    %s60 = scalar_lea.vmem [#allocation2], 8
    %s61 = scalar_lea.vmem [#allocation0], 8
    %v62 = vld [vmem:[%s61] sm:$0xff]
    %63 = vperm.xlu0 %4, %v62
    %v64 = vpop.permute.xlu0 %63
    %65 = vst [vmem:[%s60] sm:$0xff] %v64
    %s67 = sshllo.u32 0, 4
    %v69 = vld [vmem:[#allocation2] sm:%s67]
    %s70 = sshllo.u32 0, 4
    %71 = vst [vmem:[#allocation3] sm:%s70] %v69
    %s72 = scalar_lea.vmem [#allocation2], 8
    %v73 = vld [vmem:[%s72] sm:%s67]
    %s74 = sshllo.u32 0, 4
    %s75 = scalar_lea.vmem [#allocation3], 4
    %76 = vst [vmem:[%s75] sm:%s74] %v73
    // Predicated region
    $region39: #{reverse.0} parent=1 // pred_check
      _
    $region40: #{reverse.0} parent=1 // pred_check_branch
      %78 = sbr.rel (0) target = $region42
    $region41: #{reverse.0} parent=1 // pred_region
      // Predicated region
      $region43: #{reverse.0} parent=41 // pred_check
        _
      $region44: #{reverse.0} parent=41 // pred_check_branch
        %80 = sbr.rel target = $region46
      $region45: #{reverse.0} parent=41 // pred_region
        // Predicated region
        $region58: #{reverse.0} parent=45 // pred_check
          _
        $region59: #{reverse.0} parent=45 // pred_check_branch
          %97 = sbr.rel (0) target = $region61
        $region60: #{reverse.0} parent=45 // pred_region
          loop: start=0, step=1, limit=1
          $region62: #{reverse.0} parent=60 // loop_pre_header
            _
          $region63: #{reverse.0} parent=60 // loop_header
            %s99 = sphi 0, %s103
            %p100 = scmp.ge.s32.totalorder %s99, 1
            %s104 = sphi [#allocation3], [#allocation3]
            %s105 = sphi %s1, %s1
          $region64: #{reverse.0} parent=60 // loop_header_branch
            %102 = sbr.rel (%p100) target = $region68
          $region65: #{reverse.0} parent=60 // loop_body
            _
          $region66: #{reverse.0} parent=60 // loop_footer
            %s103 = sadd.s32 1, %s99
          $region67: #{reverse.0} parent=60 // loop_footer_branch
            %98 = sbr.rel target = $region63
          $region68: #{reverse.0} parent=60 // loop_exit
            _
          loop: start=0, step=1, limit=1
          $region69: #{reverse.0} parent=60 // loop_pre_header
            _
          $region70: #{reverse.0} parent=60 // loop_header
            %s108 = sphi 0, %s112
            %p109 = scmp.ge.s32.totalorder %s108, 1
            %s113 = sphi [#allocation3], [#allocation3]
            %s114 = sphi %s1, %s1
          $region71: #{reverse.0} parent=60 // loop_header_branch
            %111 = sbr.rel (%p109) target = $region75
          $region72: #{reverse.0} parent=60 // loop_body
            %v115 = vld [vmem:[%s113] sm:$0xf]
            %116 = vst [vmem:[%s114] sm:$0xf] %v115
            %v117 = vld [vmem:[%s113 + $0x4] sm:$0xf]
            %118 = vst [vmem:[%s114 + $0x4] sm:$0xf] %v117
          $region73: #{reverse.0} parent=60 // loop_footer
            %s112 = sadd.s32 1, %s108
          $region74: #{reverse.0} parent=60 // loop_footer_branch
            %107 = sbr.rel target = $region70
          $region75: #{reverse.0} parent=60 // loop_exit
            _
        $region61: #{reverse.0} parent=45 // pred_fallthru
          _
      $region46: #{reverse.0} parent=41 // pred_fallthru
        _
      // Predicated region
      $region47: #{reverse.0} parent=41 // pred_check
        _
      $region48: #{reverse.0} parent=41 // pred_check_branch
        %82 = sbr.rel (0) target = $region50
      $region49: #{reverse.0} parent=41 // pred_region
        loop: start=0, step=1, limit=1
        $region51: #{reverse.0} parent=49 // loop_pre_header
          _
        $region52: #{reverse.0} parent=49 // loop_header
          %s85 = sphi 0, %s89
          %p86 = scmp.ge.s32.totalorder %s85, 1
          %s90 = sphi [#allocation3], [#allocation3]
          %s91 = sphi %s1, %s1
        $region53: #{reverse.0} parent=49 // loop_header_branch
          %88 = sbr.rel (%p86) target = $region57
        $region54: #{reverse.0} parent=49 // loop_body
          %v92 = vld [vmem:[%s90] sm:$0xf]
          %93 = vst [vmem:[%s91] sm:$0xf] %v92
          %v94 = vld [vmem:[%s90 + $0x4] sm:$0xf]
          %95 = vst [vmem:[%s91 + $0x4] sm:$0xf] %v94
        $region55: #{reverse.0} parent=49 // loop_footer
          %s89 = sadd.s32 1, %s85
        $region56: #{reverse.0} parent=49 // loop_footer_branch
          %84 = sbr.rel target = $region52
        $region57: #{reverse.0} parent=49 // loop_exit
          _
      $region50: #{reverse.0} parent=41 // pred_fallthru
        _
    $region42: #{reverse.0} parent=1 // pred_fallthru
      _
    %119 = vnop

// kernel: spectral_conv1d.1
$region0: #{spectral_conv1d.1}
  #allocation0 [shape = 'u32[]', space=smem, size = 0x4, offset = 0x4, fixed_abs, tag = 'smem constant byte address 0x4 - core index']
  #allocation1 [shape = 'u32[144,128]{1,0:T(1,128)}', space=vmem, size = 0x12000, scoped, tag = 'internal scratch']
  %s0 = inlined_call_operand.vmem [shape: f32[2,4,16], index: 0, kind: input, shape index: {}]
  %s1 = inlined_call_operand.vmem [shape: f32[2,4,16], index: 1, kind: input, shape index: {}]
  %s2 = inlined_call_operand.vmem [shape: f32[4,4,16], index: 2, kind: input, shape index: {}]
  %s3 = inlined_call_operand.vmem [shape: f32[4,4,16], index: 3, kind: input, shape index: {}]
  %s4 = inlined_call_operand.vmem [shape: f32[2,4,16], index: 4, kind: output, shape index: {0}]
  %s5 = inlined_call_operand.vmem [shape: f32[2,4,16], index: 5, kind: output, shape index: {1}]
  %6 = xla_tuple %s4, %s5
  %s7 = sld [smem:[#allocation0]]
  $region57: #{spectral_conv1d.1} parent=0
    _
  %s9 = ssub.s32 1, %s7
  %s10 = scalar_select 0, %s9, %s7
  loop: start=0, step=1, limit=4
  $region2: #{spectral_conv1d.1} parent=0 // loop_pre_header
    _
  $region3: #{spectral_conv1d.1} parent=0 // loop_header
    %s12 = sphi 0, %s16
    %p13 = scmp.ge.s32.totalorder %s12, 4
    %s22 = sphi 0, %s24
    %s25 = sphi 0, %s22
    %s26 = sphi 0, %s25
    %s42 = sphi 0, %s26
    %s48 = sphi 0, %s50
    %s51 = sphi 0, %s48
    %s52 = sphi 0, %s51
    %s68 = sphi 0, %s52
    %s72 = sphi 0, %s72
    %s74 = sphi 0, %s72
    %s75 = sphi 0, %s74
    %s89 = sphi 0, %s75
    %s93 = sphi 0, %s93
    %s95 = sphi 0, %s93
    %s96 = sphi 0, %s95
    %s110 = sphi 0, %s96
    %s116 = sphi 0, %s118
    %s119 = sphi 0, %s116
    %s120 = sphi 0, %s119
    %s136 = sphi 0, %s120
    %s142 = sphi 0, %s144
    %s145 = sphi 0, %s142
    %s146 = sphi 0, %s145
    %s162 = sphi 0, %s146
  $region4: #{spectral_conv1d.1} parent=0 // loop_header_branch
    %15 = sbr.rel (%p13) target = $region8
  $region5: #{spectral_conv1d.1} parent=0 // loop_body
    %s17 = ssub.s32 %s12, 1
    %s18 = ssub.s32 %s12, 2
    %s19 = sadd.s32 %s12, 1
    %s20 = ssub.s32 %s12, %s19
    %p21 = scmp.eq.s32.totalorder %s20, 0
    %s23 = sadd.s32 %s22, 1
    %s24 = scalar_select %p21, %s22, %s23
    %p27 = pneg %p21
    %p28 = scmp.eq.s32.totalorder %s12, 1
    %p29 = por %p27, %p28
    %p30 = scmp.ne.s32.totalorder %s22, %s25
    %p31 = scmp.eq.s32.totalorder %s12, 0
    %p32 = por %p30, %p31
    %p33 = scmp.ne.s32.totalorder %s22, %s25
    %p34 = scmp.eq.s32.totalorder %s17, 1
    %p35 = por %p33, %p34
    %p36 = scmp.ne.s32.totalorder %s25, %s26
    %p37 = scmp.eq.s32.totalorder %s17, 0
    %p38 = por %p36, %p37
    %p39 = scmp.ne.s32.totalorder %s25, %s26
    %p40 = scmp.eq.s32.totalorder %s18, 1
    %p41 = por %p39, %p40
    %p43 = scmp.ne.s32.totalorder %s26, %s42
    %p44 = scmp.eq.s32.totalorder %s18, 0
    %p45 = por %p43, %p44
    %s46 = ssub.s32 %s12, %s19
    %p47 = scmp.eq.s32.totalorder %s46, 0
    %s49 = sadd.s32 %s48, 1
    %s50 = scalar_select %p47, %s48, %s49
    %p53 = pneg %p47
    %p54 = scmp.eq.s32.totalorder %s12, 1
    %p55 = por %p53, %p54
    %p56 = scmp.ne.s32.totalorder %s48, %s51
    %p57 = scmp.eq.s32.totalorder %s12, 0
    %p58 = por %p56, %p57
    %p59 = scmp.ne.s32.totalorder %s48, %s51
    %p60 = scmp.eq.s32.totalorder %s17, 1
    %p61 = por %p59, %p60
    %p62 = scmp.ne.s32.totalorder %s51, %s52
    %p63 = scmp.eq.s32.totalorder %s17, 0
    %p64 = por %p62, %p63
    %p65 = scmp.ne.s32.totalorder %s51, %s52
    %p66 = scmp.eq.s32.totalorder %s18, 1
    %p67 = por %p65, %p66
    %p69 = scmp.ne.s32.totalorder %s52, %s68
    %p70 = scmp.eq.s32.totalorder %s18, 0
    %p71 = por %p69, %p70
    %s73 = sadd.s32 %s72, 1
    %p76 = scmp.eq.s32.totalorder %s12, 1
    %p77 = scmp.ne.s32.totalorder %s72, %s74
    %p78 = scmp.eq.s32.totalorder %s12, 0
    %p79 = por %p77, %p78
    %p80 = scmp.ne.s32.totalorder %s72, %s74
    %p81 = scmp.eq.s32.totalorder %s17, 1
    %p82 = por %p80, %p81
    %p83 = scmp.ne.s32.totalorder %s74, %s75
    %p84 = scmp.eq.s32.totalorder %s17, 0
    %p85 = por %p83, %p84
    %p86 = scmp.ne.s32.totalorder %s74, %s75
    %p87 = scmp.eq.s32.totalorder %s18, 1
    %p88 = por %p86, %p87
    %p90 = scmp.ne.s32.totalorder %s75, %s89
    %p91 = scmp.eq.s32.totalorder %s18, 0
    %p92 = por %p90, %p91
    %s94 = sadd.s32 %s93, 1
    %p97 = scmp.eq.s32.totalorder %s12, 1
    %p98 = scmp.ne.s32.totalorder %s93, %s95
    %p99 = scmp.eq.s32.totalorder %s12, 0
    %p100 = por %p98, %p99
    %p101 = scmp.ne.s32.totalorder %s93, %s95
    %p102 = scmp.eq.s32.totalorder %s17, 1
    %p103 = por %p101, %p102
    %p104 = scmp.ne.s32.totalorder %s95, %s96
    %p105 = scmp.eq.s32.totalorder %s17, 0
    %p106 = por %p104, %p105
    %p107 = scmp.ne.s32.totalorder %s95, %s96
    %p108 = scmp.eq.s32.totalorder %s18, 1
    %p109 = por %p107, %p108
    %p111 = scmp.ne.s32.totalorder %s96, %s110
    %p112 = scmp.eq.s32.totalorder %s18, 0
    %p113 = por %p111, %p112
    %s114 = ssub.s32 %s12, %s19
    %p115 = scmp.eq.s32.totalorder %s114, 0
    %s117 = sadd.s32 %s116, 1
    %s118 = scalar_select %p115, %s116, %s117
    %p121 = pneg %p115
    %p122 = scmp.eq.s32.totalorder %s12, 1
    %p123 = por %p121, %p122
    %p124 = scmp.ne.s32.totalorder %s116, %s119
    %p125 = scmp.eq.s32.totalorder %s12, 0
    %p126 = por %p124, %p125
    %p127 = scmp.ne.s32.totalorder %s116, %s119
    %p128 = scmp.eq.s32.totalorder %s17, 1
    %p129 = por %p127, %p128
    %p130 = scmp.ne.s32.totalorder %s119, %s120
    %p131 = scmp.eq.s32.totalorder %s17, 0
    %p132 = por %p130, %p131
    %p133 = scmp.ne.s32.totalorder %s119, %s120
    %p134 = scmp.eq.s32.totalorder %s18, 1
    %p135 = por %p133, %p134
    %p137 = scmp.ne.s32.totalorder %s120, %s136
    %p138 = scmp.eq.s32.totalorder %s18, 0
    %p139 = por %p137, %p138
    %s140 = ssub.s32 %s12, %s19
    %p141 = scmp.eq.s32.totalorder %s140, 0
    %s143 = sadd.s32 %s142, 1
    %s144 = scalar_select %p141, %s142, %s143
    %p147 = pneg %p141
    %p148 = scmp.eq.s32.totalorder %s12, 1
    %p149 = por %p147, %p148
    %p150 = scmp.ne.s32.totalorder %s142, %s145
    %p151 = scmp.eq.s32.totalorder %s12, 0
    %p152 = por %p150, %p151
    %p153 = scmp.ne.s32.totalorder %s142, %s145
    %p154 = scmp.eq.s32.totalorder %s17, 1
    %p155 = por %p153, %p154
    %p156 = scmp.ne.s32.totalorder %s145, %s146
    %p157 = scmp.eq.s32.totalorder %s17, 0
    %p158 = por %p156, %p157
    %p159 = scmp.ne.s32.totalorder %s145, %s146
    %p160 = scmp.eq.s32.totalorder %s18, 1
    %p161 = por %p159, %p160
    %p163 = scmp.ne.s32.totalorder %s146, %s162
    %p164 = scmp.eq.s32.totalorder %s18, 0
    %p165 = por %p163, %p164
    %p166 = scmp.le.s32.totalorder 1, %s12
    %p167 = scmp.lt.s32.totalorder %s12, 3
    %p168 = pnand %p166, %p167
    %p169 = pneg %p168
    // Predicated region
    $region9: #{spectral_conv1d.1} parent=5 // pred_check
      _
    $region10: #{spectral_conv1d.1} parent=5 // pred_check_branch
      %171 = sbr.rel (%p168) target = $region12
    $region11: #{spectral_conv1d.1} parent=5 // pred_region
      %s172 = ssub.s32 %s12, 1
      // Predicated region
      $region13: #{spectral_conv1d.1} parent=11 // pred_check
        %p173 = pneg %p85
      $region14: #{spectral_conv1d.1} parent=11 // pred_check_branch
        %175 = sbr.rel (%p173) target = $region16
      $region15: #{spectral_conv1d.1} parent=11 // pred_region
        _
      $region16: #{spectral_conv1d.1} parent=11 // pred_fallthru
        _
      // Predicated region
      $region17: #{spectral_conv1d.1} parent=11 // pred_check
        %p176 = pneg %p106
      $region18: #{spectral_conv1d.1} parent=11 // pred_check_branch
        %178 = sbr.rel (%p176) target = $region20
      $region19: #{spectral_conv1d.1} parent=11 // pred_region
        _
      $region20: #{spectral_conv1d.1} parent=11 // pred_fallthru
        _
    $region12: #{spectral_conv1d.1} parent=5 // pred_fallthru
      _
    %p179 = scmp.lt.s32.totalorder %s12, 2
    // Predicated region
    $region21: #{spectral_conv1d.1} parent=5 // pred_check
      %p180 = pneg %p179
    $region22: #{spectral_conv1d.1} parent=5 // pred_check_branch
      %182 = sbr.rel (%p180) target = $region24
    $region23: #{spectral_conv1d.1} parent=5 // pred_region
      // Predicated region
      $region25: #{spectral_conv1d.1} parent=23 // pred_check
        %p183 = pneg %p32
      $region26: #{spectral_conv1d.1} parent=23 // pred_check_branch
        %185 = sbr.rel (%p183) target = $region28
      $region27: #{spectral_conv1d.1} parent=23 // pred_region
        %p186 = scmp.lt.s32.totalorder %s12, 1
        %s187 = scalar_select %p186, %s12, 1
        %s188 = smul.addr %s187, 4
        %s189 = scalar_lea.vmem %s0, %s188
      $region28: #{spectral_conv1d.1} parent=23 // pred_fallthru
        _
      // Predicated region
      $region29: #{spectral_conv1d.1} parent=23 // pred_check
        %p190 = pneg %p58
      $region30: #{spectral_conv1d.1} parent=23 // pred_check_branch
        %192 = sbr.rel (%p190) target = $region32
      $region31: #{spectral_conv1d.1} parent=23 // pred_region
        %p193 = scmp.lt.s32.totalorder %s12, 1
        %s194 = scalar_select %p193, %s12, 1
        %s195 = smul.addr %s194, 4
        %s196 = scalar_lea.vmem %s1, %s195
      $region32: #{spectral_conv1d.1} parent=23 // pred_fallthru
        _
    $region24: #{spectral_conv1d.1} parent=5 // pred_fallthru
      _
    %p197 = scmp.le.s32.totalorder 1, %s12
    %p198 = scmp.lt.s32.totalorder %s12, 3
    %p199 = pnand %p197, %p198
    %p200 = pneg %p199
    // Predicated region
    $region33: #{spectral_conv1d.1} parent=5 // pred_check
      _
    $region34: #{spectral_conv1d.1} parent=5 // pred_check_branch
      %202 = sbr.rel (%p199) target = $region36
    $region35: #{spectral_conv1d.1} parent=5 // pred_region
      %s203 = ssub.s32 %s12, 1
      %p204 = scmp.lt.s32.totalorder %s17, 1
      %s205 = scalar_select %p204, %s17, 1
      %s206 = smul.addr %s205, 4
      %s207 = scalar_lea.vmem %s0, %s206
      %p208 = pneg %p38
      %p209 = pneg %p35
      %p210 = scmp.lt.s32.totalorder %s17, 1
      %s211 = scalar_select %p210, %s17, 1
      %s212 = smul.addr %s211, 4
      %s213 = scalar_lea.vmem %s1, %s212
      %p214 = pneg %p64
      %p215 = pneg %p61
      %p216 = pneg %p85
      %p217 = pneg %p82
      %p218 = pneg %p106
      %p219 = pneg %p103
      %p220 = pneg %p132
      %p221 = pneg %p129
      %p222 = scmp.lt.s32.totalorder %s17, 1
      %s223 = scalar_select %p222, %s17, 1
      %s224 = smul.addr %s223, 4
      %s225 = scalar_lea.vmem %s4, %s224
      %p226 = pneg %p158
      %p227 = pneg %p155
      %p228 = scmp.lt.s32.totalorder %s17, 1
      %s229 = scalar_select %p228, %s17, 1
      %s230 = smul.addr %s229, 4
      %s231 = scalar_lea.vmem %s5, %s230
      %p232 = scmp.lt.s32.totalorder %s17, 1
      %s233 = scalar_select %p232, %s17, 1
      %s234 = smul.addr %s233, 4
      %s235 = scalar_lea.vmem %s0, %s234
      %p236 = scmp.lt.s32.totalorder %s17, 1
      %s237 = scalar_select %p236, %s17, 1
      %s238 = smul.addr %s237, 4
      %s239 = scalar_lea.vmem %s1, %s238
      %p240 = scmp.lt.s32.totalorder %s17, 1
      %s241 = scalar_select %p240, %s17, 1
      %s242 = smul.addr %s241, 4
      %s243 = scalar_lea.vmem %s4, %s242
      %p244 = scmp.lt.s32.totalorder %s17, 1
      %s245 = scalar_select %p244, %s17, 1
      %s246 = smul.addr %s245, 4
      %s247 = scalar_lea.vmem %s5, %s246
      %v248 = vld [vmem:[%s235] sm:$0xf]
      %v251 = vunpack.c.l.s4 1966171168
      %v252 = vunpack.c.0.s8 %v251
      %v253 = vlaneseq
      %v254 = vshrl.u32 %v253, 7
      %v255 = vsub.s32 %v252, %v254
      %v256 = vrot.slane %v248, %v255
      %v257 = vcombine.high %v256, %v256
      %v259 = vunpack.c.l.s4 1966171168
      %v260 = vunpack.c.0.s8 %v259
      %v261 = vlaneseq
      %v262 = vshrl.u32 %v261, 7
      %v263 = vsub.s32 %v260, %v262
      %v264 = vrot.slane %v256, %v263
      %v266 = vunpack.c.l.s4 1966171168
      %v267 = vunpack.c.0.s8 %v266
      %v268 = vlaneseq
      %v269 = vshrl.u32 %v268, 7
      %v270 = vsub.s32 %v267, %v269
      %v271 = vrot.slane %v257, %v270
      %v272 = vcombine.high %v264, %v264
      %v273 = vcombine.high %v271, %v271
      %v274 = vld [vmem:[%s239] sm:$0xf]
      %v277 = vunpack.c.l.s4 1966171168
      %v278 = vunpack.c.0.s8 %v277
      %v279 = vlaneseq
      %v280 = vshrl.u32 %v279, 7
      %v281 = vsub.s32 %v278, %v280
      %v282 = vrot.slane %v274, %v281
      %v283 = vcombine.high %v282, %v282
      %v285 = vunpack.c.l.s4 1966171168
      %v286 = vunpack.c.0.s8 %v285
      %v287 = vlaneseq
      %v288 = vshrl.u32 %v287, 7
      %v289 = vsub.s32 %v286, %v288
      %v290 = vrot.slane %v282, %v289
      %v292 = vunpack.c.l.s4 1966171168
      %v293 = vunpack.c.0.s8 %v292
      %v294 = vlaneseq
      %v295 = vshrl.u32 %v294, 7
      %v296 = vsub.s32 %v293, %v295
      %v297 = vrot.slane %v283, %v296
      %v298 = vcombine.high %v290, %v290
      %v299 = vcombine.high %v297, %v297
      %v300 = vld [vmem:[%s2] sm:$0xf]
      %v301 = vld [vmem:[%s2 + $0x4] sm:$0xf]
      %v302 = vld [vmem:[%s2 + $0x8] sm:$0xf]
      %v303 = vld [vmem:[%s2 + $0xc] sm:$0xf]
      %v304 = vld [vmem:[%s3] sm:$0xf]
      %v305 = vld [vmem:[%s3 + $0x4] sm:$0xf]
      %v306 = vld [vmem:[%s3 + $0x8] sm:$0xf]
      %v307 = vld [vmem:[%s3 + $0xc] sm:$0xf]
      %v308 = vlaneseq
      %v309 = vshrl.u32 %v308, 7
      %v310 = vsub.s32 0, %v309
      %v311 = vrot.slane %v264, %v310
      %v312 = vlaneseq
      %v313 = vshrl.u32 %v312, 7
      %v314 = vsub.s32 0, %v313
      %v315 = vrot.slane %v271, %v314
      %v316 = vlaneseq
      %v317 = vshrl.u32 %v316, 7
      %v318 = vsub.s32 0, %v317
      %v319 = vrot.slane %v272, %v318
      %v320 = vlaneseq
      %v321 = vshrl.u32 %v320, 7
      %v322 = vsub.s32 0, %v321
      %v323 = vrot.slane %v273, %v322
      %v328 = vmul.f32 %v311, %v300
      %v329 = vmul.f32 %v315, %v301
      %v330 = vmul.f32 %v319, %v302
      %v331 = vmul.f32 %v323, %v303
      %v332 = vlaneseq
      %v333 = vshrl.u32 %v332, 7
      %v334 = vsub.s32 0, %v333
      %v335 = vrot.slane %v290, %v334
      %v336 = vlaneseq
      %v337 = vshrl.u32 %v336, 7
      %v338 = vsub.s32 0, %v337
      %v339 = vrot.slane %v297, %v338
      %v340 = vlaneseq
      %v341 = vshrl.u32 %v340, 7
      %v342 = vsub.s32 0, %v341
      %v343 = vrot.slane %v298, %v342
      %v344 = vlaneseq
      %v345 = vshrl.u32 %v344, 7
      %v346 = vsub.s32 0, %v345
      %v347 = vrot.slane %v299, %v346
      %v352 = vmul.f32 %v335, %v304
      %v353 = vmul.f32 %v339, %v305
      %v354 = vmul.f32 %v343, %v306
      %v355 = vmul.f32 %v347, %v307
      %v356 = vsub.f32 %v328, %v352
      %v357 = vsub.f32 %v329, %v353
      %v358 = vsub.f32 %v330, %v354
      %v359 = vsub.f32 %v331, %v355
      %vm360 = vcmask 125952
      %v361 = vsel %vm360, %v356, 0.0
      %v362 = vsel %vm360, %v357, 0.0
      %v363 = vadd.f32 %v361, %v362
      %v364 = vsel %vm360, %v358, 0.0
      %v365 = vadd.f32 %v363, %v364
      %v366 = vsel %vm360, %v359, 0.0
      %v367 = vadd.f32 %v365, %v366
      %368 = vst.msk [vmem:[%s243] sm:$0xf] %vm360, %v367
      %v369 = vmul.f32 %v311, %v304
      %v370 = vmul.f32 %v315, %v305
      %v371 = vmul.f32 %v319, %v306
      %v372 = vmul.f32 %v323, %v307
      %v373 = vmul.f32 %v335, %v300
      %v374 = vmul.f32 %v339, %v301
      %v375 = vmul.f32 %v343, %v302
      %v376 = vmul.f32 %v347, %v303
      %v377 = vadd.f32 %v369, %v373
      %v378 = vadd.f32 %v370, %v374
      %v379 = vadd.f32 %v371, %v375
      %v380 = vadd.f32 %v372, %v376
      %v381 = vsel %vm360, %v377, 0.0
      %v382 = vsel %vm360, %v378, 0.0
      %v383 = vadd.f32 %v381, %v382
      %v384 = vsel %vm360, %v379, 0.0
      %v385 = vadd.f32 %v383, %v384
      %v386 = vsel %vm360, %v380, 0.0
      %v387 = vadd.f32 %v385, %v386
      %388 = vst.msk [vmem:[%s247] sm:$0xf] %vm360, %v387
      %p389 = scmp.lt.s32.totalorder %s17, 1
      %s390 = scalar_select %p389, %s17, 1
      %s391 = smul.addr %s390, 4
      %s392 = scalar_lea.vmem %s4, %s391
      %p393 = scmp.lt.s32.totalorder %s17, 1
      %s394 = scalar_select %p393, %s17, 1
      %s395 = smul.addr %s394, 4
      %s396 = scalar_lea.vmem %s5, %s395
      // Predicated region
      $region37: #{spectral_conv1d.1} parent=35 // pred_check
        %p397 = pneg %p129
      $region38: #{spectral_conv1d.1} parent=35 // pred_check_branch
        %399 = sbr.rel (%p397) target = $region40
      $region39: #{spectral_conv1d.1} parent=35 // pred_region
        _
      $region40: #{spectral_conv1d.1} parent=35 // pred_fallthru
        _
      // Predicated region
      $region41: #{spectral_conv1d.1} parent=35 // pred_check
        %p400 = pneg %p155
      $region42: #{spectral_conv1d.1} parent=35 // pred_check_branch
        %402 = sbr.rel (%p400) target = $region44
      $region43: #{spectral_conv1d.1} parent=35 // pred_region
        _
      $region44: #{spectral_conv1d.1} parent=35 // pred_fallthru
        _
    $region36: #{spectral_conv1d.1} parent=5 // pred_fallthru
      _
    %p403 = scmp.le.s32.totalorder 2, %s12
    // Predicated region
    $region45: #{spectral_conv1d.1} parent=5 // pred_check
      %p404 = pneg %p403
    $region46: #{spectral_conv1d.1} parent=5 // pred_check_branch
      %406 = sbr.rel (%p404) target = $region48
    $region47: #{spectral_conv1d.1} parent=5 // pred_region
      %s407 = ssub.s32 %s12, 2
      // Predicated region
      $region49: #{spectral_conv1d.1} parent=47 // pred_check
        %p408 = pneg %p135
      $region50: #{spectral_conv1d.1} parent=47 // pred_check_branch
        %410 = sbr.rel (%p408) target = $region52
      $region51: #{spectral_conv1d.1} parent=47 // pred_region
        %p411 = scmp.lt.s32.totalorder %s18, 1
        %s412 = scalar_select %p411, %s18, 1
        %s413 = smul.addr %s412, 4
        %s414 = scalar_lea.vmem %s4, %s413
      $region52: #{spectral_conv1d.1} parent=47 // pred_fallthru
        _
      // Predicated region
      $region53: #{spectral_conv1d.1} parent=47 // pred_check
        %p415 = pneg %p161
      $region54: #{spectral_conv1d.1} parent=47 // pred_check_branch
        %417 = sbr.rel (%p415) target = $region56
      $region55: #{spectral_conv1d.1} parent=47 // pred_region
        %p418 = scmp.lt.s32.totalorder %s18, 1
        %s419 = scalar_select %p418, %s18, 1
        %s420 = smul.addr %s419, 4
        %s421 = scalar_lea.vmem %s5, %s420
      $region56: #{spectral_conv1d.1} parent=47 // pred_fallthru
        _
    $region48: #{spectral_conv1d.1} parent=5 // pred_fallthru
      _
  $region6: #{spectral_conv1d.1} parent=0 // loop_footer
    %s16 = sadd.s32 1, %s12
  $region7: #{spectral_conv1d.1} parent=0 // loop_footer_branch
    %11 = sbr.rel target = $region3
  $region8: #{spectral_conv1d.1} parent=0 // loop_exit
    _

</llo_original>
